<compile_context>
chip_gen: v7x
topology: tpu7x:2x2x1
jax: 0.10.0
libtpu: 0.0.40
codegen_flags: <defaults>
</compile_context>

<pallas_src>
import jax
import jax.numpy as jnp
from jax.experimental import pallas as pl
from jax.experimental.pallas import tpu as pltpu


def _identity_copy_kernel(x_ref, o_ref):
    # The "view" has no arithmetic; the kernel body is a dense VMEM copy.
    o_ref[...] = x_ref[...]


def latent_reshape(x: jax.Array, latent_size: int) -> jax.Array:
    """Preferred implementation: metadata-only, identical to torch .view()."""
    return x.reshape(x.shape[0], latent_size, 4, 4)


_LANE_CANDIDATES = (2048, 1024, 512, 256, 128)
_SINGLE_BLOCK_BYTES = 8 * 1024 * 1024   # comfortably under scoped VMEM on v5e/v6e/v7x


def _pick_slab(total_elems: int):
    """(rows, lanes) with lanes % 128 == 0; prefer rows % 8 == 0 (unmasked vst)."""
    best_any = None
    for lanes in _LANE_CANDIDATES:
        if total_elems % lanes == 0:
            rows = total_elems // lanes
            if rows % 8 == 0:
                return rows, lanes
            if best_any is None:
                best_any = (rows, lanes)
    return best_any  # may be None if total is not a multiple of 128


def _choose_row_tile(rows: int, lanes: int, itemsize: int,
                     max_block_bytes: int = 4 * 1024 * 1024):
    """Largest multiple-of-8 divisor of `rows` whose block fits the budget."""
    cap = max(8, max_block_bytes // (lanes * itemsize))
    t = (min(cap, rows) // 8) * 8
    while t >= 8:
        if rows % t == 0:
            return t
        t -= 8
    return None


def latent_reshape_pallas(x: jax.Array, latent_size: int, *,
                          donate: bool = False) -> jax.Array:
    """Pallas copy-kernel version of LatentReshape.forward.

    Args:
      x: array with x.shape[0] == B and B * latent_size * 16 total elements.
      latent_size: channel count of the 4x4 output feature map.
      donate: if True, alias the input buffer to the output (halves HBM
        allocations); the input must not be used afterwards by the caller.

    Returns:
      (B, latent_size, 4, 4) array, same dtype as x (NCHW).
    """
    B = x.shape[0]
    D = latent_size * 4 * 4
    total = B * D
    assert x.size == total, f"cannot view {x.shape} as ({B},{latent_size},4,4)"
    itemsize = jnp.dtype(x.dtype).itemsize
    nbytes = total * itemsize

    # Lane/sublane-dense slab: rows % 8 == 0, lanes % 128 == 0 when possible.
    slab = _pick_slab(total)
    rows, lanes = slab if slab is not None else (B, D)
    x_slab = x.reshape(rows, lanes)

    aliases = {0: 0} if donate else {}
    cost = pl.CostEstimate(flops=0, transcendentals=0, bytes_accessed=2 * nbytes)

    single_block = nbytes <= _SINGLE_BLOCK_BYTES
    tile_rows = None
    if not single_block:
        tile_rows = _choose_row_tile(rows, lanes, itemsize)
        single_block = tile_rows is None   # rare: no 8-aligned tiling exists

    if single_block:
        compiler_params = None
        if nbytes > _SINGLE_BLOCK_BYTES:
            # Rare fallback path: raise scoped-VMEM enough for in + out
            # (no double-buffering with an empty grid); stays under v7x's
            # 64 MiB physical VMEM for anything ProGAN-sized.
            compiler_params = pltpu.CompilerParams(
                vmem_limit_bytes=min(2 * nbytes + (1 << 20), 48 * 1024 * 1024))
        flat_out = pl.pallas_call(
            _identity_copy_kernel,
            out_shape=jax.ShapeDtypeStruct((rows, lanes), x.dtype),
            input_output_aliases=aliases,
            cost_estimate=cost,
            compiler_params=compiler_params,
        )(x_slab)
    else:
        grid = (rows // tile_rows,)
        flat_out = pl.pallas_call(
            _identity_copy_kernel,
            out_shape=jax.ShapeDtypeStruct((rows, lanes), x.dtype),
            grid_spec=pltpu.PrefetchScalarGridSpec(
                num_scalar_prefetch=0,
                grid=grid,
                in_specs=[pl.BlockSpec((tile_rows, lanes), lambda i: (i, 0))],
                out_specs=pl.BlockSpec((tile_rows, lanes), lambda i: (i, 0)),
            ),
            input_output_aliases=aliases,
            cost_estimate=cost,
            # "parallel" lets v7x's two TensorCores each copy half; it is a
            # no-op (but harmless) on v5e/v6e's single TensorCore.
            compiler_params=pltpu.CompilerParams(
                dimension_semantics=("parallel",),
                vmem_limit_bytes=32 * 1024 * 1024,
            ),
        )(x_slab)

    # Metadata-only view to NCHW, identical to torch's x.view(B, C, 4, 4).
    return flat_out.reshape(B, latent_size, 4, 4)


if __name__ == "__main__":
    latent_size = 32
    batch = 2

    key = jax.random.PRNGKey(0)
    x = jax.random.normal(key, (batch, latent_size * 4 * 4), dtype=jnp.float32)

    # Reference (torch .view semantics), computed before the donating call.
    ref = jax.block_until_ready(jnp.reshape(x, (batch, latent_size, 4, 4)))

    # Pallas path (single full-array lane/sublane-dense block, aliased I/O).
    out = latent_reshape_pallas(x, latent_size, donate=True)
    out = jax.block_until_ready(out)

    assert out.shape == (batch, latent_size, 4, 4)
    assert out.dtype == jnp.float32
    assert bool(jnp.array_equal(out, ref))

    # Preferred metadata-only path also matches.
    out2 = jax.block_until_ready(latent_reshape(ref.reshape(batch, -1), latent_size))
    assert bool(jnp.array_equal(out2, ref))

    print("KERNEL_OK")
</pallas_src>

<mosaic_0001>
module attributes {stable_mosaic.version = 11 : i64} {
  func.func @_identity_copy_kernel(%arg0: memref<8x128xf32, #tpu.memory_space<vmem>>, %arg1: memref<8x128xf32, #tpu.memory_space<vmem>>) attributes {dimension_semantics = [], scalar_prefetch = 0 : i64, scratch_operands = 0 : i64, tpu.core_type = #tpu.core_type<tc>} {
    %c0 = arith.constant 0 : index
    %c0_0 = arith.constant 0 : index
    %0 = vector.load %arg0[%c0, %c0_0] : memref<8x128xf32, #tpu.memory_space<vmem>>, vector<8x128xf32>
    %c0_1 = arith.constant 0 : index
    %c0_2 = arith.constant 0 : index
    %1 = vector.load %arg1[%c0_1, %c0_2] : memref<8x128xf32, #tpu.memory_space<vmem>>, vector<8x128xf32>
    tpu.vector_store %arg1[%c0_1, %c0_2], %0 {strides = array<i32>} : memref<8x128xf32, #tpu.memory_space<vmem>>, vector<8x128xf32>,
    return
  }
}

</mosaic_0001>

<llo_original>
// kernel: tpu_custom_call.1
$region0: #{tpu_custom_call.1}
  #allocation0 [shape = 'u32[]', space=smem, size = 0x4, offset = 0x4, fixed_abs, tag = 'smem constant byte address 0x4 - core index']
  #allocation1 [shape = 'u32[144,128]{1,0:T(1,128)}', space=vmem, size = 0x12000, scoped, tag = 'internal scratch']
  %s0 = inlined_call_operand.hbm [shape: f32[8,128], index: 0, kind: input, shape index: {}, may-alias: {0,1}]
  %s1 = inlined_call_operand.hbm [shape: f32[8,128], index: 1, kind: output, shape index: {}, may-alias: {0,1}]
  %s2 = sld [smem:[#allocation0]]
  $region18: #{tpu_custom_call.1} parent=0
    _
  %s4 = ssub.s32 1, %s2
  %s5 = scalar_select 0, %s4, %s2
  $region1: #{tpu_custom_call.1} parent=0
    #allocation2 [shape = 'u8[4096]{0}', space=vmem, size = 0x1000, scoped, tag = 'input window, operand 0, single buffered']
    #allocation3 [shape = 's32[1]{0}', space=sflag, size = 0x4, scoped, tag = 'scoped memory for tpu_custom_call.1']
    #allocation4 [shape = 's32[1]{0}', space=sflag, size = 0x4, scoped, tag = 'scoped memory for tpu_custom_call.1']
    #allocation5 [shape = 'u8[4096]{0}', space=vmem, size = 0x1000, scoped, tag = 'output window, operand 0, single buffered']
    %6 = vsyncpa [#allocation3], 0
    %7 = vsyncpa [#allocation4], 0
    // Predicated region
    $region2: #{tpu_custom_call.1} parent=1 // pred_check
      _
    $region3: #{tpu_custom_call.1} parent=1 // pred_check_branch
      %9 = sbr.rel (0) target = $region5
    $region4: #{tpu_custom_call.1} parent=1 // pred_region
      %s11 = ssub.s32 128, 128
      %12 = vsyncadd [#allocation3], %s11
      %s14 = sshll.u32 [#allocation2], 4
      %s15 = int_to_ptr.vmem [resolvable:$true] %s14
      %17 = dma.hbm_to_vmem [thread:$0]  %s0, 128, %s15, [#allocation3]
    $region5: #{tpu_custom_call.1} parent=1 // pred_fallthru
      _
    // Predicated region
    $region6: #{tpu_custom_call.1} parent=1 // pred_check
      _
    $region7: #{tpu_custom_call.1} parent=1 // pred_check_branch
      %19 = sbr.rel (0) target = $region9
    $region8: #{tpu_custom_call.1} parent=1 // pred_region
      %20 = dma.done [#allocation3], 128
    $region9: #{tpu_custom_call.1} parent=1 // pred_fallthru
      _
    %v21 = vld [vmem:[#allocation2] sm:$0xff]
    %22 = vst [vmem:[#allocation5] sm:$0xff] %v21
    // Predicated region
    $region10: #{tpu_custom_call.1} parent=1 // pred_check
      _
    $region11: #{tpu_custom_call.1} parent=1 // pred_check_branch
      %24 = sbr.rel (0) target = $region13
    $region12: #{tpu_custom_call.1} parent=1 // pred_region
      %s26 = ssub.s32 128, 128
      %27 = vsyncadd [#allocation4], %s26
      %s29 = sshll.u32 [#allocation5], 4
      %s30 = int_to_ptr.vmem [resolvable:$true] %s29
      %32 = dma.vmem_to_hbm [thread:$0]  %s30, 128, %s1, [#allocation4]
    $region13: #{tpu_custom_call.1} parent=1 // pred_fallthru
      _
    // Predicated region
    $region14: #{tpu_custom_call.1} parent=1 // pred_check
      _
    $region15: #{tpu_custom_call.1} parent=1 // pred_check_branch
      %34 = sbr.rel (0) target = $region17
    $region16: #{tpu_custom_call.1} parent=1 // pred_region
      %35 = dma.done [#allocation4], 128
    $region17: #{tpu_custom_call.1} parent=1 // pred_fallthru
      _
    %36 = vsyncpa [#allocation3], 1
    %37 = vsyncpa [#allocation4], 1

</llo_original>
